<compile_context>
chip_gen: v7x
topology: tpu7x:2x2x1
jax: 0.10.0
libtpu: 0.0.40
codegen_flags: <defaults>
</compile_context>

<pallas_src>
import jax
import jax.numpy as jnp
from jax.experimental import pallas as pl
from jax.experimental.pallas import tpu as pltpu


def _vmem_limits():
    """(working-set budget, vmem_limit_bytes) -- generation aware."""
    try:
        cap = int(pltpu.get_tpu_info().vmem_capacity_bytes)
    except Exception:
        cap = 64 * 1024 * 1024          # v7x worst case (64 MiB per TC)
    budget = min(cap // 2, 48 * 1024 * 1024)
    limit = min((cap * 3) // 4, 96 * 1024 * 1024)
    return budget, limit


def _choose_tiles(b, d, m, n, itemsize, budget):
    """Pick (tb, tm, L, nm): batch rows / pair columns per grid step.

    tm is the lane-dense output tile over the pair axis, L the matching input
    width.  The in-kernel de-interleave costs ~4*L*tm*d MXU flops per batch row
    against ~3*d*tm*itemsize HBM bytes, so tm is kept modest unless the
    ~0.35us/step fixed cost would dominate (tiny b*d), in which case a bigger
    tile trades some MXU time for fewer steps.
    """
    if m <= 512:
        tm, L = m, n                     # single column tile, exact shapes
    else:
        tm = 128
        while tm < 512 and b * 3 * d * tm * itemsize < 1024 * 1024:
            tm *= 2
        L = 2 * tm
    nm = 1 if tm == m else pl.cdiv(m, tm)

    resident = 2 * d * d * 4 + 2 * 2 * L * tm * 4      # W + (Dc, S1), double-buffered
    temps = 8 * d * (L + tm)                           # live f32 temporaries (one row)
    per_row = 2 * (d * L + d * tm) * itemsize          # x + out blocks, double-buffered
    tb = max(min((budget - resident - temps) // max(per_row, 1),
                 (4 * 1024 * 1024) // max((d * L + d * tm) * itemsize, 1),
                 b, 256), 1)
    # v7x has 2 TensorCores per chip: keep >= 2 grid steps when we can.
    if nm * pl.cdiv(b, tb) < 2 and b > 1:
        tb = pl.cdiv(b, 2)
    return int(tb), int(tm), int(L), int(nm)


def _selection_matrices(L, tm):
    """Dc (pair difference) and S1 (slot-1 pick) selection matrices, (L, tm)."""
    rows = jnp.arange(L)
    cols = jnp.arange(tm)
    hit = (rows[:, None] // 2) == cols[None, :]
    slot1 = (rows[:, None] % 2) == 1
    dc = jnp.where(hit, jnp.where(slot1, -1.0, 1.0), 0.0).astype(jnp.float32)
    s1 = jnp.where(hit & slot1, 1.0, 0.0).astype(jnp.float32)
    return dc, s1


def _make_kernel(tb, d, tm, L, n, m, n_odd, sanitize):
    def kernel(x_ref, w_ref, dc_ref, s1_ref, o_ref):
        w = w_ref[...]                    # (d, d)  conv weight W[c_out, c_in], f32
        dc = dc_ref[...]                  # (L, tm) pair-difference selector
        s1 = s1_ref[...]                  # (L, tm) slot-1 selector
        mi = pl.program_id(1)

        if sanitize:
            # Lanes past the true sequence length may hold stale VMEM from the
            # clipped edge DMA: zero them before they can reach the MXU.
            col = jax.lax.broadcasted_iota(jnp.int32, (d, L), 1) + mi * L
            in_valid = col < n
        if n_odd:
            pair = jax.lax.broadcasted_iota(jnp.int32, (d, tm), 1) + mi * tm
            is_pad_pair = pair == (m - 1)

        def body(bi, carry):
            x = x_ref[bi].astype(jnp.float32)                            # (d, L)
            if sanitize:
                x = jnp.where(in_valid, x, 0.0)
            # In-kernel de-interleave on the MXU (exact +-1/0 products).
            diffc = jnp.dot(x, dc, preferred_element_type=jnp.float32)   # x0 - x1
            x1c = jnp.dot(x, s1, preferred_element_type=jnp.float32)     # x1
            # softmax over a 2-slot axis == sigmoid(logit0 - logit1), and
            # logit0 - logit1 == W @ (x0 - x1): a single half-width matmul.
            ld = jnp.dot(w, diffc, preferred_element_type=jnp.float32)   # (d, tm)
            # NOTE: pl.reciprocal(..., approx=True) would push the divide onto
            # the EUP slot, but the exact divide keeps tight parity with the
            # reference softmax; this kernel is HBM-bound anyway.
            a0 = 1.0 / (1.0 + jnp.exp(-ld))
            if n_odd:
                # Reference masks the padded slot's logit to -finfo.max, i.e.
                # attention exactly (1, 0) on that single pair -> out == x0.
                a0 = jnp.where(is_pad_pair, 1.0, a0)
            out = x1c + a0 * diffc                   # == a0*x0 + (1-a0)*x1
            o_ref[bi] = out.astype(o_ref.dtype)
            return carry

        jax.lax.fori_loop(0, tb, body, 0, unroll=min(tb, 8))

    return kernel


def attention_pool(x, w):
    """x: (b, d, n), w: (d, d, 1, 1) Conv2d weight -> (b, d, ceil(n/2))."""
    b, d, n = x.shape
    m = (n + 1) // 2
    n_odd = (n % 2) == 1

    budget, vmem_limit = _vmem_limits()
    tb, tm, L, nm = _choose_tiles(b, d, m, n, x.dtype.itemsize, budget)
    nb = pl.cdiv(b, tb)
    sanitize = (nm * L) > n          # edge tile DMA is clipped -> zero those lanes

    w2d = w.reshape(d, d).astype(jnp.float32)   # free metadata reshape of (d,d,1,1)
    dc, s1 = _selection_matrices(L, tm)
    # TODO(synk): for d >= ~2048 (f32) the resident (d, d) weight and the
    # selection matmuls get heavy; cast the kernel to bf16 and/or single-buffer
    # the constant inputs (pipeline_mode=pl.Buffered(1)) in that regime.

    kernel = _make_kernel(tb=tb, d=d, tm=tm, L=L, n=n, m=m,
                          n_odd=n_odd, sanitize=sanitize)

    return pl.pallas_call(
        kernel,
        out_shape=jax.ShapeDtypeStruct((b, d, m), x.dtype),
        grid=(nb, nm),
        in_specs=[
            pl.BlockSpec((tb, d, L), lambda bi, mi: (bi, 0, mi)),   # x, natural layout
            pl.BlockSpec((d, d), lambda bi, mi: (0, 0)),            # W (resident)
            pl.BlockSpec((L, tm), lambda bi, mi: (0, 0)),           # Dc (resident)
            pl.BlockSpec((L, tm), lambda bi, mi: (0, 0)),           # S1 (resident)
        ],
        out_specs=pl.BlockSpec((tb, d, tm), lambda bi, mi: (bi, 0, mi)),
        compiler_params=pltpu.CompilerParams(
            dimension_semantics=("parallel", "parallel"),
            vmem_limit_bytes=vmem_limit),
    )(x, w2d, dc, s1)


def attention_pool_ref(x, w):
    """Pure-JAX reference mirroring the PyTorch forward."""
    b, d, n = x.shape
    rem = n % 2
    x_pad = jnp.pad(x, ((0, 0), (0, 0), (0, rem)))
    m = x_pad.shape[-1] // 2
    xp = x_pad.reshape(b, d, m, 2)
    w2d = w.reshape(d, d)
    logits = jnp.einsum("oc,bcmt->bomt", w2d, xp)
    if rem > 0:
        mask = jnp.zeros((b, 1, n), dtype=bool)
        mask = jnp.pad(mask, ((0, 0), (0, 0), (0, rem)), constant_values=True)
        mask = mask.reshape(b, 1, m, 2)
        logits = jnp.where(mask, -jnp.finfo(logits.dtype).max, logits)
    attn = jax.nn.softmax(logits, axis=-1)
    return (xp * attn).sum(axis=-1)


if __name__ == "__main__":
    key = jax.random.PRNGKey(0)
    kx, kw = jax.random.split(key)

    b, dim = 2, 32
    # deterministic Conv2d(dim, dim, 1, bias=False) weight: (dim, dim, 1, 1)
    w = jax.random.normal(kw, (dim, dim, 1, 1), dtype=jnp.float32) * 0.1

    for n in (17, 16):   # odd n exercises the padded-pair path; even n skips it
        x = jax.random.normal(kx, (b, dim, n), dtype=jnp.float32)
        out = jax.block_until_ready(attention_pool(x, w))
        ref = attention_pool_ref(x, w)
        assert out.shape == (b, dim, (n + 1) // 2), out.shape
        err = float(jnp.max(jnp.abs(out - ref)))
        assert jnp.allclose(out, ref, atol=1e-5, rtol=1e-5), err

    print("KERNEL_OK")
</pallas_src>

<mosaic_0001>
module attributes {stable_mosaic.version = 11 : i64} {
  func.func @kernel(%arg0: i32, %arg1: i32, %arg2: memref<1x32x17xf32, #tpu.memory_space<vmem>>, %arg3: memref<32x32xf32, #tpu.memory_space<vmem>>, %arg4: memref<17x9xf32, #tpu.memory_space<vmem>>, %arg5: memref<17x9xf32, #tpu.memory_space<vmem>>, %arg6: memref<1x32x9xf32, #tpu.memory_space<vmem>>) attributes {dimension_semantics = [#tpu.dimension_semantics<parallel>, #tpu.dimension_semantics<parallel>], iteration_bounds = array<i64: 2, 1>, scalar_prefetch = 0 : i64, scratch_operands = 0 : i64, tpu.core_type = #tpu.core_type<tc>, window_params = [{transform_indices = @transform_0, window_bounds = array<i64: 1, 32, 17>}, {pipeline_mode = #tpu.pipeline_mode<synchronous>, transform_indices = @transform_1, window_bounds = array<i64: 32, 32>}, {pipeline_mode = #tpu.pipeline_mode<synchronous>, transform_indices = @transform_2, window_bounds = array<i64: 17, 9>}, {pipeline_mode = #tpu.pipeline_mode<synchronous>, transform_indices = @transform_3, window_bounds = array<i64: 17, 9>}, {transform_indices = @transform_4, window_bounds = array<i64: 1, 32, 9>}]} {
    %c0 = arith.constant 0 : index
    %c0_0 = arith.constant 0 : index
    %0 = vector.load %arg3[%c0, %c0_0] : memref<32x32xf32, #tpu.memory_space<vmem>>, vector<32x32xf32>
    %c0_1 = arith.constant 0 : index
    %c0_2 = arith.constant 0 : index
    %1 = vector.load %arg4[%c0_1, %c0_2] : memref<17x9xf32, #tpu.memory_space<vmem>>, vector<17x9xf32>
    %c0_3 = arith.constant 0 : index
    %c0_4 = arith.constant 0 : index
    %2 = vector.load %arg5[%c0_3, %c0_4] : memref<17x9xf32, #tpu.memory_space<vmem>>, vector<17x9xf32>
    %3 = tpu.iota {dimensions = array<i32: 1>} : vector<32x9xi32>
    %c9_i32 = arith.constant 9 : i32
    %4 = arith.muli %arg1, %c9_i32 : i32
    %5 = vector.broadcast %4 : i32 to vector<32x9xi32>
    %6 = arith.addi %3, %5 : vector<32x9xi32>
    %c8_i32 = arith.constant 8 : i32
    %7 = vector.broadcast %c8_i32 : i32 to vector<32x9xi32>
    %8 = arith.cmpi eq, %6, %7 : vector<32x9xi32>
    %c0_i32 = arith.constant 0 : i32
    %9 = arith.index_cast %c0_i32 : i32 to index
    %c0_5 = arith.constant 0 : index
    %c0_6 = arith.constant 0 : index
    %10 = vector.load %arg2[%9, %c0_5, %c0_6] : memref<1x32x17xf32, #tpu.memory_space<vmem>>, vector<1x32x17xf32>
    %11 = vector.shape_cast %10 : vector<1x32x17xf32> to vector<32x17xf32>
    %cst = arith.constant dense<0.000000e+00> : vector<32x9xf32>
    %12 = tpu.matmul %11, %1, %cst {dimension_numbers = #tpu.dot_dimension_numbers<[1], [0], [0], [1], [0, 0, 1, 1], [], []>} : vector<32x17xf32>, vector<17x9xf32>, vector<32x9xf32> -> vector<32x9xf32>
    %cst_7 = arith.constant dense<0.000000e+00> : vector<32x9xf32>
    %13 = tpu.matmul %11, %2, %cst_7 {dimension_numbers = #tpu.dot_dimension_numbers<[1], [0], [0], [1], [0, 0, 1, 1], [], []>} : vector<32x17xf32>, vector<17x9xf32>, vector<32x9xf32> -> vector<32x9xf32>
    %cst_8 = arith.constant dense<0.000000e+00> : vector<32x9xf32>
    %14 = tpu.matmul %0, %12, %cst_8 {dimension_numbers = #tpu.dot_dimension_numbers<[1], [0], [0], [1], [0, 0, 1, 1], [], []>} : vector<32x32xf32>, vector<32x9xf32>, vector<32x9xf32> -> vector<32x9xf32>
    %cst_9 = arith.constant 0.000000e+00 : f32
    %15 = vector.broadcast %cst_9 : f32 to vector<32x9xf32>
    %16 = arith.subf %15, %14 : vector<32x9xf32>
    %17 = math.exp %16 : vector<32x9xf32>
    %cst_10 = arith.constant 1.000000e+00 : f32
    %18 = vector.broadcast %cst_10 : f32 to vector<32x9xf32>
    %19 = arith.addf %18, %17 : vector<32x9xf32>
    %cst_11 = arith.constant 1.000000e+00 : f32
    %20 = vector.broadcast %cst_11 : f32 to vector<32x9xf32>
    %21 = arith.divf %20, %19 : vector<32x9xf32>
    %cst_12 = arith.constant 1.000000e+00 : f32
    %22 = vector.broadcast %cst_12 : f32 to vector<32x9xf32>
    %23 = arith.select %8, %22, %21 : vector<32x9xi1>, vector<32x9xf32>
    %24 = arith.mulf %23, %12 : vector<32x9xf32>
    %25 = arith.addf %13, %24 : vector<32x9xf32>
    %26 = arith.index_cast %c0_i32 : i32 to index
    %c0_13 = arith.constant 0 : index
    %c0_14 = arith.constant 0 : index
    %27 = vector.load %arg6[%26, %c0_13, %c0_14] : memref<1x32x9xf32, #tpu.memory_space<vmem>>, vector<1x32x9xf32>
    %28 = vector.shape_cast %27 : vector<1x32x9xf32> to vector<32x9xf32>
    %29 = vector.shape_cast %25 : vector<32x9xf32> to vector<1x32x9xf32>
    tpu.vector_store %arg6[%26, %c0_13, %c0_14], %29 {strides = array<i32>} : memref<1x32x9xf32, #tpu.memory_space<vmem>>, vector<1x32x9xf32>,
    %c1_i32 = arith.constant 1 : i32
    return
  }
  func.func @transform_0(%arg0: i32, %arg1: i32) -> (i32, i32, i32) {
    %c0_i32 = arith.constant 0 : i32
    %c0_i32_0 = arith.constant 0 : i32
    return %arg0, %c0_i32, %arg1 : i32, i32, i32
  }
  func.func @transform_1(%arg0: i32, %arg1: i32) -> (i32, i32) {
    %c0_i32 = arith.constant 0 : i32
    %c0_i32_0 = arith.constant 0 : i32
    %c0_i32_1 = arith.constant 0 : i32
    return %c0_i32, %c0_i32_0 : i32, i32
  }
  func.func @transform_2(%arg0: i32, %arg1: i32) -> (i32, i32) {
    %c0_i32 = arith.constant 0 : i32
    %c0_i32_0 = arith.constant 0 : i32
    %c0_i32_1 = arith.constant 0 : i32
    return %c0_i32, %c0_i32_0 : i32, i32
  }
  func.func @transform_3(%arg0: i32, %arg1: i32) -> (i32, i32) {
    %c0_i32 = arith.constant 0 : i32
    %c0_i32_0 = arith.constant 0 : i32
    %c0_i32_1 = arith.constant 0 : i32
    return %c0_i32, %c0_i32_0 : i32, i32
  }
  func.func @transform_4(%arg0: i32, %arg1: i32) -> (i32, i32, i32) {
    %c0_i32 = arith.constant 0 : i32
    %c0_i32_0 = arith.constant 0 : i32
    return %arg0, %c0_i32, %arg1 : i32, i32, i32
  }
}

</mosaic_0001>

<llo_original>
// kernel: tpu_custom_call.1
$region0: #{tpu_custom_call.1}
  #allocation0 [shape = 'u32[]', space=smem, size = 0x4, offset = 0x4, fixed_abs, tag = 'smem constant byte address 0x4 - core index']
  #allocation1 [shape = 'u32[144,128]{1,0:T(1,128)}', space=vmem, size = 0x12000, scoped, tag = 'internal scratch']
  %s0 = inlined_call_operand.vmem [shape: f32[2,32,17], index: 0, kind: input, shape index: {}]
  %s1 = inlined_call_operand.vmem [shape: f32[32,32], index: 1, kind: input, shape index: {}]
  %s2 = inlined_call_operand.vmem [shape: f32[17,9], index: 2, kind: input, shape index: {}]
  %s3 = inlined_call_operand.vmem [shape: f32[17,9], index: 3, kind: input, shape index: {}]
  %s4 = inlined_call_operand.vmem [shape: f32[2,32,9], index: 4, kind: output, shape index: {}]
  %s5 = sld [smem:[#allocation0]]
  $region49: #{tpu_custom_call.1} parent=0
    _
  %s7 = ssub.s32 1, %s5
  %s8 = scalar_select 0, %s7, %s5
  loop: start=0, step=1, limit=4
  $region2: #{tpu_custom_call.1} parent=0 // loop_pre_header
    _
  $region3: #{tpu_custom_call.1} parent=0 // loop_header
    %s10 = sphi 0, %s14
    %p11 = scmp.ge.s32.totalorder %s10, 4
    %s17 = sphi 0, %s29
    %s18 = sphi 0, %s25
    %s19 = sphi 0, %s17
    %s20 = sphi 0, %s18
    %s21 = sphi 0, %s19
    %s22 = sphi 0, %s20
    %s34 = sphi 0, %s36
    %s37 = sphi 0, %s34
    %s38 = sphi 0, %s37
    %s54 = sphi 0, %s38
    %s58 = sphi 0, %s58
    %s60 = sphi 0, %s58
    %s61 = sphi 0, %s60
    %s75 = sphi 0, %s61
    %s79 = sphi 0, %s79
    %s81 = sphi 0, %s79
    %s82 = sphi 0, %s81
    %s96 = sphi 0, %s82
    %s100 = sphi 0, %s100
    %s102 = sphi 0, %s100
    %s103 = sphi 0, %s102
    %s117 = sphi 0, %s103
    %s125 = sphi 0, %s127
    %s128 = sphi 0, %s125
    %s129 = sphi 0, %s128
    %s145 = sphi 0, %s129
  $region4: #{tpu_custom_call.1} parent=0 // loop_header_branch
    %13 = sbr.rel (%p11) target = $region8
  $region5: #{tpu_custom_call.1} parent=0 // loop_body
    %s15 = ssub.s32 %s10, 1
    %s16 = ssub.s32 %s10, 2
    %s23 = sadd.s32 1, %s18
    %p24 = scmp.ge.s32.totalorder %s23, 1
    %s25 = scalar_select %p24, 0, %s23
    %s26 = sadd.s32 1, %s17
    %s27 = scalar_select %p24, %s26, %s17
    %p28 = scmp.ge.s32.totalorder %s27, 2
    %s29 = scalar_select %p28, 0, %s27
    %s30 = ssub.s32 %s17, %s29
    %s31 = ssub.s32 %s18, %s25
    %s32 = sor.u32 %s30, %s31
    %p33 = scmp.eq.s32.totalorder %s32, 0
    %s35 = sadd.s32 %s34, 1
    %s36 = scalar_select %p33, %s34, %s35
    %p39 = pneg %p33
    %p40 = scmp.eq.s32.totalorder %s10, 1
    %p41 = por %p39, %p40
    %p42 = scmp.ne.s32.totalorder %s34, %s37
    %p43 = scmp.eq.s32.totalorder %s10, 0
    %p44 = por %p42, %p43
    %p45 = scmp.ne.s32.totalorder %s34, %s37
    %p46 = scmp.eq.s32.totalorder %s15, 1
    %p47 = por %p45, %p46
    %p48 = scmp.ne.s32.totalorder %s37, %s38
    %p49 = scmp.eq.s32.totalorder %s15, 0
    %p50 = por %p48, %p49
    %p51 = scmp.ne.s32.totalorder %s37, %s38
    %p52 = scmp.eq.s32.totalorder %s16, 1
    %p53 = por %p51, %p52
    %p55 = scmp.ne.s32.totalorder %s38, %s54
    %p56 = scmp.eq.s32.totalorder %s16, 0
    %p57 = por %p55, %p56
    %s59 = sadd.s32 %s58, 1
    %p62 = scmp.eq.s32.totalorder %s10, 1
    %p63 = scmp.ne.s32.totalorder %s58, %s60
    %p64 = scmp.eq.s32.totalorder %s10, 0
    %p65 = por %p63, %p64
    %p66 = scmp.ne.s32.totalorder %s58, %s60
    %p67 = scmp.eq.s32.totalorder %s15, 1
    %p68 = por %p66, %p67
    %p69 = scmp.ne.s32.totalorder %s60, %s61
    %p70 = scmp.eq.s32.totalorder %s15, 0
    %p71 = por %p69, %p70
    %p72 = scmp.ne.s32.totalorder %s60, %s61
    %p73 = scmp.eq.s32.totalorder %s16, 1
    %p74 = por %p72, %p73
    %p76 = scmp.ne.s32.totalorder %s61, %s75
    %p77 = scmp.eq.s32.totalorder %s16, 0
    %p78 = por %p76, %p77
    %s80 = sadd.s32 %s79, 1
    %p83 = scmp.eq.s32.totalorder %s10, 1
    %p84 = scmp.ne.s32.totalorder %s79, %s81
    %p85 = scmp.eq.s32.totalorder %s10, 0
    %p86 = por %p84, %p85
    %p87 = scmp.ne.s32.totalorder %s79, %s81
    %p88 = scmp.eq.s32.totalorder %s15, 1
    %p89 = por %p87, %p88
    %p90 = scmp.ne.s32.totalorder %s81, %s82
    %p91 = scmp.eq.s32.totalorder %s15, 0
    %p92 = por %p90, %p91
    %p93 = scmp.ne.s32.totalorder %s81, %s82
    %p94 = scmp.eq.s32.totalorder %s16, 1
    %p95 = por %p93, %p94
    %p97 = scmp.ne.s32.totalorder %s82, %s96
    %p98 = scmp.eq.s32.totalorder %s16, 0
    %p99 = por %p97, %p98
    %s101 = sadd.s32 %s100, 1
    %p104 = scmp.eq.s32.totalorder %s10, 1
    %p105 = scmp.ne.s32.totalorder %s100, %s102
    %p106 = scmp.eq.s32.totalorder %s10, 0
    %p107 = por %p105, %p106
    %p108 = scmp.ne.s32.totalorder %s100, %s102
    %p109 = scmp.eq.s32.totalorder %s15, 1
    %p110 = por %p108, %p109
    %p111 = scmp.ne.s32.totalorder %s102, %s103
    %p112 = scmp.eq.s32.totalorder %s15, 0
    %p113 = por %p111, %p112
    %p114 = scmp.ne.s32.totalorder %s102, %s103
    %p115 = scmp.eq.s32.totalorder %s16, 1
    %p116 = por %p114, %p115
    %p118 = scmp.ne.s32.totalorder %s103, %s117
    %p119 = scmp.eq.s32.totalorder %s16, 0
    %p120 = por %p118, %p119
    %s121 = ssub.s32 %s17, %s29
    %s122 = ssub.s32 %s18, %s25
    %s123 = sor.u32 %s121, %s122
    %p124 = scmp.eq.s32.totalorder %s123, 0
    %s126 = sadd.s32 %s125, 1
    %s127 = scalar_select %p124, %s125, %s126
    %p130 = pneg %p124
    %p131 = scmp.eq.s32.totalorder %s10, 1
    %p132 = por %p130, %p131
    %p133 = scmp.ne.s32.totalorder %s125, %s128
    %p134 = scmp.eq.s32.totalorder %s10, 0
    %p135 = por %p133, %p134
    %p136 = scmp.ne.s32.totalorder %s125, %s128
    %p137 = scmp.eq.s32.totalorder %s15, 1
    %p138 = por %p136, %p137
    %p139 = scmp.ne.s32.totalorder %s128, %s129
    %p140 = scmp.eq.s32.totalorder %s15, 0
    %p141 = por %p139, %p140
    %p142 = scmp.ne.s32.totalorder %s128, %s129
    %p143 = scmp.eq.s32.totalorder %s16, 1
    %p144 = por %p142, %p143
    %p146 = scmp.ne.s32.totalorder %s129, %s145
    %p147 = scmp.eq.s32.totalorder %s16, 0
    %p148 = por %p146, %p147
    %p149 = scmp.le.s32.totalorder 1, %s10
    %p150 = scmp.lt.s32.totalorder %s10, 3
    %p151 = pnand %p149, %p150
    %p152 = pneg %p151
    // Predicated region
    $region9: #{tpu_custom_call.1} parent=5 // pred_check
      _
    $region10: #{tpu_custom_call.1} parent=5 // pred_check_branch
      %154 = sbr.rel (%p151) target = $region12
    $region11: #{tpu_custom_call.1} parent=5 // pred_region
      %s155 = ssub.s32 %s10, 1
      // Predicated region
      $region13: #{tpu_custom_call.1} parent=11 // pred_check
        %p156 = pneg %p71
      $region14: #{tpu_custom_call.1} parent=11 // pred_check_branch
        %158 = sbr.rel (%p156) target = $region16
      $region15: #{tpu_custom_call.1} parent=11 // pred_region
        _
      $region16: #{tpu_custom_call.1} parent=11 // pred_fallthru
        _
      // Predicated region
      $region17: #{tpu_custom_call.1} parent=11 // pred_check
        %p159 = pneg %p92
      $region18: #{tpu_custom_call.1} parent=11 // pred_check_branch
        %161 = sbr.rel (%p159) target = $region20
      $region19: #{tpu_custom_call.1} parent=11 // pred_region
        _
      $region20: #{tpu_custom_call.1} parent=11 // pred_fallthru
        _
      // Predicated region
      $region21: #{tpu_custom_call.1} parent=11 // pred_check
        %p162 = pneg %p113
      $region22: #{tpu_custom_call.1} parent=11 // pred_check_branch
        %164 = sbr.rel (%p162) target = $region24
      $region23: #{tpu_custom_call.1} parent=11 // pred_region
        _
      $region24: #{tpu_custom_call.1} parent=11 // pred_fallthru
        _
    $region12: #{tpu_custom_call.1} parent=5 // pred_fallthru
      _
    %p165 = scmp.lt.s32.totalorder %s10, 2
    // Predicated region
    $region25: #{tpu_custom_call.1} parent=5 // pred_check
      %p166 = pneg %p165
    $region26: #{tpu_custom_call.1} parent=5 // pred_check_branch
      %168 = sbr.rel (%p166) target = $region28
    $region27: #{tpu_custom_call.1} parent=5 // pred_region
      // Predicated region
      $region29: #{tpu_custom_call.1} parent=27 // pred_check
        %p169 = pneg %p44
      $region30: #{tpu_custom_call.1} parent=27 // pred_check_branch
        %171 = sbr.rel (%p169) target = $region32
      $region31: #{tpu_custom_call.1} parent=27 // pred_region
        %p172 = scmp.lt.s32.totalorder %s17, 1
        %s173 = scalar_select %p172, %s17, 1
        %p174 = scmp.lt.s32.totalorder %s18, 0
        %s175 = scalar_select %p174, %s18, 0
        %s176 = smul.addr %s173, 4
        %s177 = sadd.s32 %s175, %s176
        %s178 = smul.addr %s177, 8
        %s179 = scalar_lea.vmem %s0, %s178
      $region32: #{tpu_custom_call.1} parent=27 // pred_fallthru
        _
    $region28: #{tpu_custom_call.1} parent=5 // pred_fallthru
      _
    %p180 = scmp.le.s32.totalorder 1, %s10
    %p181 = scmp.lt.s32.totalorder %s10, 3
    %p182 = pnand %p180, %p181
    %p183 = pneg %p182
    // Predicated region
    $region33: #{tpu_custom_call.1} parent=5 // pred_check
      _
    $region34: #{tpu_custom_call.1} parent=5 // pred_check_branch
      %185 = sbr.rel (%p182) target = $region36
    $region35: #{tpu_custom_call.1} parent=5 // pred_region
      %s186 = ssub.s32 %s10, 1
      %p187 = scmp.lt.s32.totalorder %s19, 1
      %s188 = scalar_select %p187, %s19, 1
      %p189 = scmp.lt.s32.totalorder %s20, 0
      %s190 = scalar_select %p189, %s20, 0
      %s191 = smul.addr %s188, 4
      %s192 = sadd.s32 %s190, %s191
      %s193 = smul.addr %s192, 8
      %s194 = scalar_lea.vmem %s0, %s193
      %p195 = pneg %p50
      %p196 = pneg %p47
      %p197 = pneg %p71
      %p198 = pneg %p68
      %p199 = pneg %p92
      %p200 = pneg %p89
      %p201 = pneg %p113
      %p202 = pneg %p110
      %p203 = pneg %p141
      %p204 = pneg %p138
      %p205 = scmp.lt.s32.totalorder %s19, 1
      %s206 = scalar_select %p205, %s19, 1
      %p207 = scmp.lt.s32.totalorder %s20, 0
      %s208 = scalar_select %p207, %s20, 0
      %s209 = smul.addr %s206, 4
      %s210 = sadd.s32 %s208, %s209
      %s211 = smul.addr %s210, 8
      %s212 = scalar_lea.vmem %s4, %s211
      %p213 = scmp.lt.s32.totalorder %s19, 1
      %s214 = scalar_select %p213, %s19, 1
      %p215 = scmp.lt.s32.totalorder %s20, 0
      %s216 = scalar_select %p215, %s20, 0
      %s217 = smul.addr %s214, 4
      %s218 = sadd.s32 %s216, %s217
      %s219 = smul.addr %s218, 8
      %s220 = scalar_lea.vmem %s0, %s219
      %p221 = scmp.lt.s32.totalorder %s19, 1
      %s222 = scalar_select %p221, %s19, 1
      %p223 = scmp.lt.s32.totalorder %s20, 0
      %s224 = scalar_select %p223, %s20, 0
      %s225 = smul.addr %s222, 4
      %s226 = sadd.s32 %s224, %s225
      %s227 = smul.addr %s226, 8
      %s228 = scalar_lea.vmem %s4, %s227
      %v229 = vld [vmem:[%s1] sm:$0xff]
      %v230 = vld [vmem:[%s1 + $0x8] sm:$0xff]
      %v231 = vld [vmem:[%s1 + $0x10] sm:$0xff]
      %v232 = vld [vmem:[%s1 + $0x18] sm:$0xff]
      %v233 = vld [vmem:[%s2] sm:$0xff]
      %v234 = vld [vmem:[%s2 + $0x8] sm:$0xff]
      %v235 = vld [vmem:[%s2 + $0x10] sm:$0x1]
      %v236 = vld [vmem:[%s3] sm:$0xff]
      %v237 = vld [vmem:[%s3 + $0x8] sm:$0xff]
      %v238 = vld [vmem:[%s3 + $0x10] sm:$0x1]
      %v239 = vlaneseq
      %v240 = vand.u32 %v239, 127
      %s241 = smul.u32 %s20, 9
      %v242 = vstv %s241
      %v243 = vadd.s32 %v240, %v242
      %vm244 = vcmp.eq.s32.totalorder %v243, 8
      %v245 = vld [vmem:[%s220] sm:$0xff]
      %v246 = vld [vmem:[%s220 + $0x8] sm:$0xff]
      %v247 = vld [vmem:[%s220 + $0x10] sm:$0xff]
      %v248 = vld [vmem:[%s220 + $0x18] sm:$0xff]
      %vm249 = vcmask 138240
      %v251 = vsel %vm249, %v245, 0
      %v254 = vsel %vm249, %v246, 0
      %v257 = vsel %vm249, %v247, 0
      %v260 = vsel %vm249, %v248, 0
      %vm262 = vcmask 1040384
      %v264 = vsel %vm262, %v235, 0
      %266 = vmatprep.subr.mxu0 0.0
      %267 = vmatpush1.msra.mxu0 %v233
      %268 = vmatprep.subr.mxu0 0.0
      %269 = vmatpush1.msra.mxu0 %v234
      %270 = vmatprep.subr.mxu0 0.0
      %271 = vmatpush1.msra.mxu0 %v264
      %272 = vmatprep.subr.mxu0 0.0
      %273 = vmatpush1.msra.mxu0 0.0
      %274 = vmatprep.subr.mxu0 0.0
      %275 = vmatpush1.msra.mxu0 0.0
      %276 = vmatprep.subr.mxu0 0.0
      %277 = vmatpush1.msra.mxu0 0.0
      %278 = vmatprep.subr.mxu0 0.0
      %279 = vmatpush1.msra.mxu0 0.0
      %280 = vmatprep.subr.mxu0 0.0
      %281 = vmatpush1.msra.mxu0 0.0
      %282 = vmatprep.subr.mxu0 0.0
      %283 = vmatpush1.msra.mxu0 0.0
      %284 = vmatprep.subr.mxu0 0.0
      %285 = vmatpush1.msra.mxu0 0.0
      %286 = vmatprep.subr.mxu0 0.0
      %287 = vmatpush1.msra.mxu0 0.0
      %288 = vmatprep.subr.mxu0 0.0
      %289 = vmatpush1.msra.mxu0 0.0
      %290 = vmatprep.subr.mxu0 0.0
      %291 = vmatpush1.msra.mxu0 0.0
      %292 = vmatprep.subr.mxu0 0.0
      %293 = vmatpush1.msra.mxu0 0.0
      %294 = vmatprep.subr.mxu0 0.0
      %295 = vmatpush1.msra.mxu0 0.0
      %296 = vmatprep.subr.mxu0 0.0
      %297 = vmatpush1.msra.mxu0 0.0
      %298 = vmatprep.subr.mxu0 0.0
      %299 = vmatpush1.msra.mxu0 0.0
      %300 = vmatprep.subr.mxu0 0.0
      %301 = vmatpush1.msra.mxu0 0.0
      %302 = vmatprep.subr.mxu0 0.0
      %303 = vmatpush1.msra.mxu0 0.0
      %304 = vmatprep.subr.mxu0 0.0
      %305 = vmatpush1.msra.mxu0 0.0
      %306 = vmatprep.subr.mxu0 0.0
      %307 = vmatpush1.msra.mxu0 0.0
      %308 = vmatprep.subr.mxu0 0.0
      %309 = vmatpush1.msra.mxu0 0.0
      %310 = vmatprep.subr.mxu0 0.0
      %311 = vmatpush1.msra.mxu0 0.0
      %312 = vmatprep.subr.mxu0 0.0
      %313 = vmatpush1.msra.mxu0 0.0
      %314 = vmatprep.subr.mxu0 0.0
      %315 = vmatpush1.msra.mxu0 0.0
      %316 = vmatprep.subr.mxu0 0.0
      %317 = vmatpush1.msra.mxu0 0.0
      %318 = vmatprep.subr.mxu0 0.0
      %319 = vmatpush1.msra.mxu0 0.0
      %320 = vmatprep.subr.mxu0 0.0
      %321 = vmatpush1.msra.mxu0 0.0
      %322 = vmatprep.subr.mxu0 0.0
      %323 = vmatpush1.msra.mxu0 0.0
      %324 = vmatprep.subr.mxu0 0.0
      %325 = vmatpush1.msra.mxu0 0.0
      %326 = vmatprep.subr.mxu0 0.0
      %327 = vmatpush1.msra.mxu0 0.0
      %328 = vmatprep.subr.mxu0 0.0
      %329 = vmatpush1.msra.mxu0 0.0
      %330 = vmatprep.mubr.f32.mxu0 0.0
      %331 = vmatmul.mubr.f32.gmra.mrb[0].mxu0 %v251
      %v332 = vpop.f32.mrb[0].mxu0
      %v333 = vadd.f32 0.0, %v332
      %v334 = vpop.f32.mrb[0].mxu0
      %335 = vmatprep.mubr.f32.mxu0 0.0
      %336 = vmatmul.mubr.f32.gmra.mrb[0].mxu0 %v254
      %v337 = vpop.f32.mrb[0].mxu0
      %v338 = vadd.f32 0.0, %v337
      %v339 = vpop.f32.mrb[0].mxu0
      %340 = vmatprep.mubr.f32.mxu0 0.0
      %341 = vmatmul.mubr.f32.gmra.mrb[0].mxu0 %v257
      %v342 = vpop.f32.mrb[0].mxu0
      %v343 = vadd.f32 0.0, %v342
      %v344 = vpop.f32.mrb[0].mxu0
      %345 = vmatprep.mubr.f32.mxu0 0.0
      %346 = vmatmul.mubr.f32.gmra.mrb[0].mxu0 %v260
      %v347 = vpop.f32.mrb[0].mxu0
      %v348 = vadd.f32 0.0, %v347
      %v349 = vpop.f32.mrb[0].mxu0
      %350 = vdwg.mxu0
      %vm351 = vcmask 261120
      %v353 = vsel %vm351, %v229, 0
      %v356 = vsel %vm351, %v230, 0
      %v359 = vsel %vm351, %v231, 0
      %v362 = vsel %vm351, %v232, 0
      %364 = vmatprep.subr.mxu0 0.0
      %365 = vmatpush1.msra.mxu0 %v333
      %366 = vmatprep.subr.mxu0 0.0
      %367 = vmatpush1.msra.mxu0 %v338
      %368 = vmatprep.subr.mxu0 0.0
      %369 = vmatpush1.msra.mxu0 %v343
      %370 = vmatprep.subr.mxu0 0.0
      %371 = vmatpush1.msra.mxu0 %v348
      %372 = vmatprep.subr.mxu0 0.0
      %373 = vmatpush1.msra.mxu0 0.0
      %374 = vmatprep.subr.mxu0 0.0
      %375 = vmatpush1.msra.mxu0 0.0
      %376 = vmatprep.subr.mxu0 0.0
      %377 = vmatpush1.msra.mxu0 0.0
      %378 = vmatprep.subr.mxu0 0.0
      %379 = vmatpush1.msra.mxu0 0.0
      %380 = vmatprep.subr.mxu0 0.0
      %381 = vmatpush1.msra.mxu0 0.0
      %382 = vmatprep.subr.mxu0 0.0
      %383 = vmatpush1.msra.mxu0 0.0
      %384 = vmatprep.subr.mxu0 0.0
      %385 = vmatpush1.msra.mxu0 0.0
      %386 = vmatprep.subr.mxu0 0.0
      %387 = vmatpush1.msra.mxu0 0.0
      %388 = vmatprep.subr.mxu0 0.0
      %389 = vmatpush1.msra.mxu0 0.0
      %390 = vmatprep.subr.mxu0 0.0
      %391 = vmatpush1.msra.mxu0 0.0
      %392 = vmatprep.subr.mxu0 0.0
      %393 = vmatpush1.msra.mxu0 0.0
      %394 = vmatprep.subr.mxu0 0.0
      %395 = vmatpush1.msra.mxu0 0.0
      %396 = vmatprep.subr.mxu0 0.0
      %397 = vmatpush1.msra.mxu0 0.0
      %398 = vmatprep.subr.mxu0 0.0
      %399 = vmatpush1.msra.mxu0 0.0
      %400 = vmatprep.subr.mxu0 0.0
      %401 = vmatpush1.msra.mxu0 0.0
      %402 = vmatprep.subr.mxu0 0.0
      %403 = vmatpush1.msra.mxu0 0.0
      %404 = vmatprep.subr.mxu0 0.0
      %405 = vmatpush1.msra.mxu0 0.0
      %406 = vmatprep.subr.mxu0 0.0
      %407 = vmatpush1.msra.mxu0 0.0
      %408 = vmatprep.subr.mxu0 0.0
      %409 = vmatpush1.msra.mxu0 0.0
      %410 = vmatprep.subr.mxu0 0.0
      %411 = vmatpush1.msra.mxu0 0.0
      %412 = vmatprep.subr.mxu0 0.0
      %413 = vmatpush1.msra.mxu0 0.0
      %414 = vmatprep.subr.mxu0 0.0
      %415 = vmatpush1.msra.mxu0 0.0
      %416 = vmatprep.subr.mxu0 0.0
      %417 = vmatpush1.msra.mxu0 0.0
      %418 = vmatprep.subr.mxu0 0.0
      %419 = vmatpush1.msra.mxu0 0.0
      %420 = vmatprep.subr.mxu0 0.0
      %421 = vmatpush1.msra.mxu0 0.0
      %422 = vmatprep.subr.mxu0 0.0
      %423 = vmatpush1.msra.mxu0 0.0
      %424 = vmatprep.subr.mxu0 0.0
      %425 = vmatpush1.msra.mxu0 0.0
      %426 = vmatprep.subr.mxu0 0.0
      %427 = vmatpush1.msra.mxu0 0.0
      %428 = vmatprep.mubr.f32.mxu0 0.0
      %429 = vmatmul.mubr.f32.gmra.mrb[0].mxu0 %v353
      %v430 = vpop.f32.mrb[0].mxu0
      %v431 = vadd.f32 0.0, %v430
      %v432 = vpop.f32.mrb[0].mxu0
      %433 = vmatprep.mubr.f32.mxu0 0.0
      %434 = vmatmul.mubr.f32.gmra.mrb[0].mxu0 %v356
      %v435 = vpop.f32.mrb[0].mxu0
      %v436 = vadd.f32 0.0, %v435
      %v437 = vpop.f32.mrb[0].mxu0
      %438 = vmatprep.mubr.f32.mxu0 0.0
      %439 = vmatmul.mubr.f32.gmra.mrb[0].mxu0 %v359
      %v440 = vpop.f32.mrb[0].mxu0
      %v441 = vadd.f32 0.0, %v440
      %v442 = vpop.f32.mrb[0].mxu0
      %443 = vmatprep.mubr.f32.mxu0 0.0
      %444 = vmatmul.mubr.f32.gmra.mrb[0].mxu0 %v362
      %v445 = vpop.f32.mrb[0].mxu0
      %v446 = vadd.f32 0.0, %v445
      %v447 = vpop.f32.mrb[0].mxu0
      %448 = vdwg.mxu0
      %v449 = vsub.f32 0.0, %v431
      %v450 = vsub.f32 0.0, %v436
      %v451 = vsub.f32 0.0, %v441
      %v452 = vsub.f32 0.0, %v446
      %v453 = vmul.f32 %v449, 1.442695
      %v454 = vpow.pop %v453
      %v455 = vmul.f32 %v450, 1.442695
      %v456 = vpow.pop %v455
      %v457 = vmul.f32 %v451, 1.442695
      %v458 = vpow.pop %v457
      %v459 = vmul.f32 %v452, 1.442695
      %v460 = vpow.pop %v459
      %v461 = vadd.f32 %v454, 1.0
      %v462 = vadd.f32 %v456, 1.0
      %v463 = vadd.f32 %v458, 1.0
      %v464 = vadd.f32 %v460, 1.0
      %v465 = vrcp.pop %v461
      %v466 = vmul.f32 1.0, %v465
      %v467 = vrcp.pop %v462
      %v468 = vmul.f32 1.0, %v467
      %v469 = vrcp.pop %v463
      %v470 = vmul.f32 1.0, %v469
      %v471 = vrcp.pop %v464
      %v472 = vmul.f32 1.0, %v471
      %v473 = vsel %vm244, 1.0, %v466
      %v474 = vsel %vm244, 1.0, %v468
      %v475 = vsel %vm244, 1.0, %v470
      %v476 = vsel %vm244, 1.0, %v472
      %v477 = vmul.f32 %v473, %v333
      %v478 = vmul.f32 %v474, %v338
      %v479 = vmul.f32 %v475, %v343
      %v480 = vmul.f32 %v476, %v348
      %v482 = vsel %vm262, %v238, 0
      %484 = vmatprep.subr.mxu0 0.0
      %485 = vmatpush1.msra.mxu0 %v236
      %486 = vmatprep.subr.mxu0 0.0
      %487 = vmatpush1.msra.mxu0 %v237
      %488 = vmatprep.subr.mxu0 0.0
      %489 = vmatpush1.msra.mxu0 %v482
      %490 = vmatprep.subr.mxu0 0.0
      %491 = vmatpush1.msra.mxu0 0.0
      %492 = vmatprep.subr.mxu0 0.0
      %493 = vmatpush1.msra.mxu0 0.0
      %494 = vmatprep.subr.mxu0 0.0
      %495 = vmatpush1.msra.mxu0 0.0
      %496 = vmatprep.subr.mxu0 0.0
      %497 = vmatpush1.msra.mxu0 0.0
      %498 = vmatprep.subr.mxu0 0.0
      %499 = vmatpush1.msra.mxu0 0.0
      %500 = vmatprep.subr.mxu0 0.0
      %501 = vmatpush1.msra.mxu0 0.0
      %502 = vmatprep.subr.mxu0 0.0
      %503 = vmatpush1.msra.mxu0 0.0
      %504 = vmatprep.subr.mxu0 0.0
      %505 = vmatpush1.msra.mxu0 0.0
      %506 = vmatprep.subr.mxu0 0.0
      %507 = vmatpush1.msra.mxu0 0.0
      %508 = vmatprep.subr.mxu0 0.0
      %509 = vmatpush1.msra.mxu0 0.0
      %510 = vmatprep.subr.mxu0 0.0
      %511 = vmatpush1.msra.mxu0 0.0
      %512 = vmatprep.subr.mxu0 0.0
      %513 = vmatpush1.msra.mxu0 0.0
      %514 = vmatprep.subr.mxu0 0.0
      %515 = vmatpush1.msra.mxu0 0.0
      %516 = vmatprep.subr.mxu0 0.0
      %517 = vmatpush1.msra.mxu0 0.0
      %518 = vmatprep.subr.mxu0 0.0
      %519 = vmatpush1.msra.mxu0 0.0
      %520 = vmatprep.subr.mxu0 0.0
      %521 = vmatpush1.msra.mxu0 0.0
      %522 = vmatprep.subr.mxu0 0.0
      %523 = vmatpush1.msra.mxu0 0.0
      %524 = vmatprep.subr.mxu0 0.0
      %525 = vmatpush1.msra.mxu0 0.0
      %526 = vmatprep.subr.mxu0 0.0
      %527 = vmatpush1.msra.mxu0 0.0
      %528 = vmatprep.subr.mxu0 0.0
      %529 = vmatpush1.msra.mxu0 0.0
      %530 = vmatprep.subr.mxu0 0.0
      %531 = vmatpush1.msra.mxu0 0.0
      %532 = vmatprep.subr.mxu0 0.0
      %533 = vmatpush1.msra.mxu0 0.0
      %534 = vmatprep.subr.mxu0 0.0
      %535 = vmatpush1.msra.mxu0 0.0
      %536 = vmatprep.subr.mxu0 0.0
      %537 = vmatpush1.msra.mxu0 0.0
      %538 = vmatprep.subr.mxu0 0.0
      %539 = vmatpush1.msra.mxu0 0.0
      %540 = vmatprep.subr.mxu0 0.0
      %541 = vmatpush1.msra.mxu0 0.0
      %542 = vmatprep.subr.mxu0 0.0
      %543 = vmatpush1.msra.mxu0 0.0
      %544 = vmatprep.subr.mxu0 0.0
      %545 = vmatpush1.msra.mxu0 0.0
      %546 = vmatprep.subr.mxu0 0.0
      %547 = vmatpush1.msra.mxu0 0.0
      %548 = vmatprep.mubr.f32.mxu0 0.0
      %549 = vmatmul.mubr.f32.gmra.mrb[0].mxu0 %v251
      %v550 = vpop.f32.mrb[0].mxu0
      %v551 = vadd.f32 %v477, %v550
      %v552 = vpop.f32.mrb[0].mxu0
      %553 = vmatprep.mubr.f32.mxu0 0.0
      %554 = vmatmul.mubr.f32.gmra.mrb[0].mxu0 %v254
      %v555 = vpop.f32.mrb[0].mxu0
      %v556 = vadd.f32 %v478, %v555
      %v557 = vpop.f32.mrb[0].mxu0
      %558 = vmatprep.mubr.f32.mxu0 0.0
      %559 = vmatmul.mubr.f32.gmra.mrb[0].mxu0 %v257
      %v560 = vpop.f32.mrb[0].mxu0
      %v561 = vadd.f32 %v479, %v560
      %v562 = vpop.f32.mrb[0].mxu0
      %563 = vmatprep.mubr.f32.mxu0 0.0
      %564 = vmatmul.mubr.f32.gmra.mrb[0].mxu0 %v260
      %v565 = vpop.f32.mrb[0].mxu0
      %v566 = vadd.f32 %v480, %v565
      %v567 = vpop.f32.mrb[0].mxu0
      %568 = vdwg.mxu0
      %vm569 = vcmask 72704
      %570 = vst.msk [vmem:[%s228] sm:$0xff] %vm569, %v551
      %571 = vst.msk [vmem:[%s228 + $0x8] sm:$0xff] %vm569, %v556
      %572 = vst.msk [vmem:[%s228 + $0x10] sm:$0xff] %vm569, %v561
      %573 = vst.msk [vmem:[%s228 + $0x18] sm:$0xff] %vm569, %v566
      %p574 = scmp.lt.s32.totalorder %s19, 1
      %s575 = scalar_select %p574, %s19, 1
      %p576 = scmp.lt.s32.totalorder %s20, 0
      %s577 = scalar_select %p576, %s20, 0
      %s578 = smul.addr %s575, 4
      %s579 = sadd.s32 %s577, %s578
      %s580 = smul.addr %s579, 8
      %s581 = scalar_lea.vmem %s4, %s580
      // Predicated region
      $region37: #{tpu_custom_call.1} parent=35 // pred_check
        %p582 = pneg %p138
      $region38: #{tpu_custom_call.1} parent=35 // pred_check_branch
        %584 = sbr.rel (%p582) target = $region40
      $region39: #{tpu_custom_call.1} parent=35 // pred_region
        _
      $region40: #{tpu_custom_call.1} parent=35 // pred_fallthru
        _
    $region36: #{tpu_custom_call.1} parent=5 // pred_fallthru
      _
    %p585 = scmp.le.s32.totalorder 2, %s10
    // Predicated region
    $region41: #{tpu_custom_call.1} parent=5 // pred_check
      %p586 = pneg %p585
    $region42: #{tpu_custom_call.1} parent=5 // pred_check_branch
      %588 = sbr.rel (%p586) target = $region44
    $region43: #{tpu_custom_call.1} parent=5 // pred_region
      %s589 = ssub.s32 %s10, 2
      // Predicated region
      $region45: #{tpu_custom_call.1} parent=43 // pred_check
        %p590 = pneg %p144
      $region46: #{tpu_custom_call.1} parent=43 // pred_check_branch
        %592 = sbr.rel (%p590) target = $region48
      $region47: #{tpu_custom_call.1} parent=43 // pred_region
        %p593 = scmp.lt.s32.totalorder %s21, 1
        %s594 = scalar_select %p593, %s21, 1
        %p595 = scmp.lt.s32.totalorder %s22, 0
        %s596 = scalar_select %p595, %s22, 0
        %s597 = smul.addr %s594, 4
        %s598 = sadd.s32 %s596, %s597
        %s599 = smul.addr %s598, 8
        %s600 = scalar_lea.vmem %s4, %s599
      $region48: #{tpu_custom_call.1} parent=43 // pred_fallthru
        _
    $region44: #{tpu_custom_call.1} parent=5 // pred_fallthru
      _
  $region6: #{tpu_custom_call.1} parent=0 // loop_footer
    %s14 = sadd.s32 1, %s10
  $region7: #{tpu_custom_call.1} parent=0 // loop_footer_branch
    %9 = sbr.rel target = $region3
  $region8: #{tpu_custom_call.1} parent=0 // loop_exit
    _

</llo_original>
